<compile_context>
chip_gen: v7x
topology: tpu7x:2x2x1
jax: 0.10.0
libtpu: 0.0.40
codegen_flags: <defaults>
</compile_context>

<pallas_src>
import functools

import jax
import jax.numpy as jnp
import numpy as np
from jax.experimental import pallas as pl
from jax.experimental.pallas import tpu as pltpu

N_IN = 4                      # n_input channels
N_OUT = 8                     # n_output channels
K = 5                         # kernel_size
DIL = 2                       # dilation
PAD = DIL * (K - 1) // 2      # Conv1dAuto "same" padding = 4
CENTER = PAD // DIL           # tap index with zero lane shift (= 2)
EPS = 1e-5                    # BatchNorm1d eps
CIN_P = 8                     # Cin padded to the f32 sublane tile; last row carries the mask
LANE = 128


def _elu(z):
    # ELU(alpha=1); exp only on the clamped branch (no overflow / wasted EUP work).
    return jnp.where(z > 0, z, jnp.exp(jnp.minimum(z, 0.0)) - 1.0)


def resnet1d_block_kernel(x_ref, w_ref, bn_ref, out_ref, *, inv_count, m_total):
    x = x_ref[...]                                # (8, M); rows >= N_IN are zero except row 7
    mask = x[CIN_P - 1:CIN_P, :]                  # (1, M) valid-lane mask (rides in the x slab;
                                                  #  its weight columns are zero, so convs ignore it)
    w = w_ref[...]                                # (24, K*8): [conv1 ; skip(center tap) ; conv2]
    gb = bn_ref[...]                              # (16, 4): cols = [g1;gs], [b1;bs], [g2;0], [b2;0]

    shifts = [(PAD - k * DIL) % m_total for k in range(K)]

    def conv(a, r0, r1):
        # dilated "same" conv: K lane rotations (XLU) + accumulated small MXU passes.
        # Zero "same" padding falls out of the zeroed tail of every 128-aligned segment
        # (Lb - L >= PAD, asserted in the wrapper) -- including the slab wrap-around.
        acc = None
        for k in range(K):
            tap = a if shifts[k] == 0 else pltpu.roll(a, shifts[k], axis=1)
            part = jnp.dot(w[r0:r1, k * CIN_P:(k + 1) * CIN_P], tap,
                           preferred_element_type=jnp.float32)
            acc = part if acc is None else acc + part
        return acc

    def bn(y, g, b):
        # training-mode BatchNorm1d, biased variance, stats over valid (n, l<L) lanes only,
        # folded into a single scale/bias pass: y*s + t.
        # NOTE: single-pass var (E[x^2]-mean^2) in f32; fine for activation-scale data.
        ym = y * mask
        s1 = jnp.sum(ym, axis=1, keepdims=True)
        s2 = jnp.sum(ym * y, axis=1, keepdims=True)
        mean = s1 * inv_count
        var = s2 * inv_count - mean * mean
        s = g * jax.lax.rsqrt(var + EPS)
        t = b - mean * s
        return y * s + t

    # stage 1: conv1 + 1x1 skip fused in one MXU accumulation, one (16, M) BN-stats pass.
    z = bn(conv(x, 0, 2 * N_OUT), gb[:, 0:1], gb[:, 1:2])          # (16, M)
    h = _elu(z[0:N_OUT]) * mask        # Dropout(p=0)=identity; mask re-zero is load-bearing
    res = z[N_OUT:2 * N_OUT]           # BN'd skip path

    # stage 2: conv2 -> BN, residual add, final ELU; single lane-dense (8, M) store.
    h2 = bn(conv(h, 2 * N_OUT, 3 * N_OUT), gb[0:N_OUT, 2:3], gb[0:N_OUT, 3:4])
    out_ref[...] = _elu(h2 + res)


def resnet1d_block(x, params):
    """x: (N, C_in, L) float32 (PyTorch NCL). Returns (N, C_out, L) float32."""
    n, c_in, L = x.shape
    assert c_in == N_IN and N_IN < CIN_P     # last slab row is reserved for the valid-lane mask
    assert PAD % DIL == 0                    # zero-shift tap must exist for the fused skip conv
    Lb = ((L + PAD + LANE - 1) // LANE) * LANE
    assert Lb - L >= PAD                     # roll-based "same" padding relies on this zero tail
    M = n * Lb

    # channel-major lane-aligned input slab (8, N*Lb); pad channels/lanes are zero,
    # last row carries the valid-lane mask (its weight columns are zero).
    x_slab = jnp.transpose(x, (1, 0, 2))                                   # (Cin, N, L)
    x_slab = jnp.pad(x_slab, ((0, CIN_P - N_IN), (0, 0), (0, Lb - L))).reshape(CIN_P, M)
    maskrow = jnp.asarray(np.tile(np.arange(Lb) < L, n), jnp.float32).reshape(1, M)
    x_slab = x_slab.at[CIN_P - 1:CIN_P, :].set(maskrow)

    # pack all conv weights into one (24, K*8) LHS, k-major, zero-padded input channels:
    #   rows  0- 7: conv1;  rows 8-15: 1x1 skip placed in the CENTER (zero-shift) tap block;
    #   rows 16-23: conv2.
    w1p = jnp.pad(jnp.transpose(params['w1'], (0, 2, 1)),
                  ((0, 0), (0, 0), (0, CIN_P - N_IN))).reshape(N_OUT, K * CIN_P)
    wsk = jnp.zeros((N_OUT, K * CIN_P), jnp.float32)
    wsk = wsk.at[:, CENTER * CIN_P:CENTER * CIN_P + N_IN].set(params['ws'][:, :, 0])
    w2p = jnp.transpose(params['w2'], (0, 2, 1)).reshape(N_OUT, K * N_OUT)
    w_all = jnp.concatenate([w1p, wsk, w2p], axis=0)                       # (24, 40)

    # pack the six (8,1) BN gamma/beta vectors into one (16, 4) array.
    z8 = jnp.zeros((N_OUT, 1), jnp.float32)
    bn_all = jnp.concatenate([
        jnp.concatenate([params['g1'], params['gs']], axis=0),
        jnp.concatenate([params['b1'], params['bs']], axis=0),
        jnp.concatenate([params['g2'], z8], axis=0),
        jnp.concatenate([params['b2'], z8], axis=0)], axis=1)              # (16, 4)

    kernel = functools.partial(resnet1d_block_kernel,
                               inv_count=1.0 / float(n * L), m_total=M)
    vmem = pl.BlockSpec(memory_space=pltpu.MemorySpace.VMEM)
    out = pl.pallas_call(
        kernel,
        out_shape=jax.ShapeDtypeStruct((N_OUT, M), jnp.float32),
        in_specs=[vmem, vmem, vmem],
        out_specs=vmem,
        compiler_params=pltpu.CompilerParams(vmem_limit_bytes=64 * 1024 * 1024),
    )(x_slab, w_all, bn_all)
    return jnp.transpose(out.reshape(N_OUT, n, Lb)[:, :, :L], (1, 0, 2))


def reference_forward(x, p):
    """Pure-JAX reference replicating the PyTorch forward (training-mode BN)."""
    def conv(x, w, dil, pad):
        return jax.lax.conv_general_dilated(
            x, w, window_strides=(1,), padding=[(pad, pad)],
            rhs_dilation=(dil,), dimension_numbers=('NCH', 'OIH', 'NCH'))

    def bn(y, g, b):
        m = y.mean(axis=(0, 2), keepdims=True)
        v = ((y - m) ** 2).mean(axis=(0, 2), keepdims=True)
        return (g.reshape(1, -1, 1) * (y - m) / jnp.sqrt(v + EPS)
                + b.reshape(1, -1, 1))

    def elu(z):
        return jnp.where(z > 0, z, jnp.exp(jnp.minimum(z, 0.0)) - 1.0)

    h = elu(bn(conv(x, p['w1'], DIL, PAD), p['g1'], p['b1']))
    h = bn(conv(h, p['w2'], DIL, PAD), p['g2'], p['b2'])
    r = bn(conv(x, p['ws'], 1, 0), p['gs'], p['bs'])
    return elu(h + r)


if __name__ == "__main__":
    key = jax.random.PRNGKey(0)
    kx, k1, k2, k3 = jax.random.split(key, 4)
    N, L = 2, 16
    x = jax.random.normal(kx, (N, N_IN, L), jnp.float32)

    def uinit(k, shape, fan_in):   # deterministic kaiming-uniform-style init
        b = 1.0 / float(np.sqrt(fan_in))
        return jax.random.uniform(k, shape, jnp.float32, -b, b)

    params = dict(
        w1=uinit(k1, (N_OUT, N_IN, K), N_IN * K),
        w2=uinit(k2, (N_OUT, N_OUT, K), N_OUT * K),
        ws=uinit(k3, (N_OUT, N_IN, 1), N_IN),
        g1=jnp.ones((N_OUT, 1), jnp.float32), b1=jnp.zeros((N_OUT, 1), jnp.float32),
        g2=jnp.ones((N_OUT, 1), jnp.float32), b2=jnp.zeros((N_OUT, 1), jnp.float32),
        gs=jnp.ones((N_OUT, 1), jnp.float32), bs=jnp.zeros((N_OUT, 1), jnp.float32),
    )

    y = jax.block_until_ready(resnet1d_block(x, params))
    y_ref = reference_forward(x, params)
    np.testing.assert_allclose(np.asarray(y), np.asarray(y_ref),
                               atol=1e-4, rtol=1e-4)
    print("KERNEL_OK")
</pallas_src>

<mosaic_0001>
module attributes {stable_mosaic.version = 11 : i64} {
  func.func @resnet1d_block_kernel(%arg0: memref<8x256xf32, #tpu.memory_space<vmem>>, %arg1: memref<24x40xf32, #tpu.memory_space<vmem>>, %arg2: memref<16x4xf32, #tpu.memory_space<vmem>>, %arg3: memref<8x256xf32, #tpu.memory_space<vmem>>) attributes {dimension_semantics = [], scalar_prefetch = 0 : i64, scratch_operands = 0 : i64, tpu.core_type = #tpu.core_type<tc>} {
    %c0 = arith.constant 0 : index
    %c0_0 = arith.constant 0 : index
    %0 = vector.load %arg0[%c0, %c0_0] : memref<8x256xf32, #tpu.memory_space<vmem>>, vector<8x256xf32>
    %1 = vector.extract_strided_slice %0 {offsets = [7, 0], sizes = [1, 256], strides = [1, 1]} : vector<8x256xf32> to vector<1x256xf32>
    %c0_1 = arith.constant 0 : index
    %c0_2 = arith.constant 0 : index
    %2 = vector.load %arg1[%c0_1, %c0_2] : memref<24x40xf32, #tpu.memory_space<vmem>>, vector<24x40xf32>
    %c0_3 = arith.constant 0 : index
    %c0_4 = arith.constant 0 : index
    %3 = vector.load %arg2[%c0_3, %c0_4] : memref<16x4xf32, #tpu.memory_space<vmem>>, vector<16x4xf32>
    %c4_i32 = arith.constant 4 : i32
    %4 = tpu.dynamic_rotate %0 by %c4_i32 dim 1 : vector<8x256xf32>, i32 -> vector<8x256xf32>
    %5 = vector.extract_strided_slice %2 {offsets = [0, 0], sizes = [16, 8], strides = [1, 1]} : vector<24x40xf32> to vector<16x8xf32>
    %cst = arith.constant dense<0.000000e+00> : vector<16x256xf32>
    %6 = tpu.matmul %5, %4, %cst {dimension_numbers = #tpu.dot_dimension_numbers<[1], [0], [0], [1], [0, 0, 1, 1], [], []>} : vector<16x8xf32>, vector<8x256xf32>, vector<16x256xf32> -> vector<16x256xf32>
    %c2_i32 = arith.constant 2 : i32
    %7 = tpu.dynamic_rotate %0 by %c2_i32 dim 1 : vector<8x256xf32>, i32 -> vector<8x256xf32>
    %8 = vector.extract_strided_slice %2 {offsets = [0, 8], sizes = [16, 8], strides = [1, 1]} : vector<24x40xf32> to vector<16x8xf32>
    %cst_5 = arith.constant dense<0.000000e+00> : vector<16x256xf32>
    %9 = tpu.matmul %8, %7, %cst_5 {dimension_numbers = #tpu.dot_dimension_numbers<[1], [0], [0], [1], [0, 0, 1, 1], [], []>} : vector<16x8xf32>, vector<8x256xf32>, vector<16x256xf32> -> vector<16x256xf32>
    %10 = arith.addf %6, %9 : vector<16x256xf32>
    %11 = vector.extract_strided_slice %2 {offsets = [0, 16], sizes = [16, 8], strides = [1, 1]} : vector<24x40xf32> to vector<16x8xf32>
    %cst_6 = arith.constant dense<0.000000e+00> : vector<16x256xf32>
    %12 = tpu.matmul %11, %0, %cst_6 {dimension_numbers = #tpu.dot_dimension_numbers<[1], [0], [0], [1], [0, 0, 1, 1], [], []>} : vector<16x8xf32>, vector<8x256xf32>, vector<16x256xf32> -> vector<16x256xf32>
    %13 = arith.addf %10, %12 : vector<16x256xf32>
    %c254_i32 = arith.constant 254 : i32
    %14 = tpu.dynamic_rotate %0 by %c254_i32 dim 1 : vector<8x256xf32>, i32 -> vector<8x256xf32>
    %15 = vector.extract_strided_slice %2 {offsets = [0, 24], sizes = [16, 8], strides = [1, 1]} : vector<24x40xf32> to vector<16x8xf32>
    %cst_7 = arith.constant dense<0.000000e+00> : vector<16x256xf32>
    %16 = tpu.matmul %15, %14, %cst_7 {dimension_numbers = #tpu.dot_dimension_numbers<[1], [0], [0], [1], [0, 0, 1, 1], [], []>} : vector<16x8xf32>, vector<8x256xf32>, vector<16x256xf32> -> vector<16x256xf32>
    %17 = arith.addf %13, %16 : vector<16x256xf32>
    %c252_i32 = arith.constant 252 : i32
    %18 = tpu.dynamic_rotate %0 by %c252_i32 dim 1 : vector<8x256xf32>, i32 -> vector<8x256xf32>
    %19 = vector.extract_strided_slice %2 {offsets = [0, 32], sizes = [16, 8], strides = [1, 1]} : vector<24x40xf32> to vector<16x8xf32>
    %cst_8 = arith.constant dense<0.000000e+00> : vector<16x256xf32>
    %20 = tpu.matmul %19, %18, %cst_8 {dimension_numbers = #tpu.dot_dimension_numbers<[1], [0], [0], [1], [0, 0, 1, 1], [], []>} : vector<16x8xf32>, vector<8x256xf32>, vector<16x256xf32> -> vector<16x256xf32>
    %21 = arith.addf %17, %20 : vector<16x256xf32>
    %22 = vector.extract_strided_slice %3 {offsets = [0, 0], sizes = [16, 1], strides = [1, 1]} : vector<16x4xf32> to vector<16x1xf32>
    %23 = vector.extract_strided_slice %3 {offsets = [0, 1], sizes = [16, 1], strides = [1, 1]} : vector<16x4xf32> to vector<16x1xf32>
    %24 = vector.broadcast %1 : vector<1x256xf32> to vector<16x256xf32>
    %25 = arith.mulf %21, %24 : vector<16x256xf32>
    %cst_9 = arith.constant dense<0.000000e+00> : vector<16xf32>
    %26 = vector.multi_reduction <add>, %25, %cst_9 [1] : vector<16x256xf32> to vector<16xf32>
    %27 = vector.shape_cast %26 : vector<16xf32> to vector<16x1xf32>
    %28 = arith.mulf %25, %21 : vector<16x256xf32>
    %cst_10 = arith.constant dense<0.000000e+00> : vector<16xf32>
    %29 = vector.multi_reduction <add>, %28, %cst_10 [1] : vector<16x256xf32> to vector<16xf32>
    %30 = vector.shape_cast %29 : vector<16xf32> to vector<16x1xf32>
    %cst_11 = arith.constant 3.125000e-02 : f32
    %31 = vector.broadcast %cst_11 : f32 to vector<16x1xf32>
    %32 = arith.mulf %27, %31 : vector<16x1xf32>
    %cst_12 = arith.constant 3.125000e-02 : f32
    %33 = vector.broadcast %cst_12 : f32 to vector<16x1xf32>
    %34 = arith.mulf %30, %33 : vector<16x1xf32>
    %35 = arith.mulf %32, %32 : vector<16x1xf32>
    %36 = arith.subf %34, %35 : vector<16x1xf32>
    %cst_13 = arith.constant 9.99999974E-6 : f32
    %37 = vector.broadcast %cst_13 : f32 to vector<16x1xf32>
    %38 = arith.addf %36, %37 : vector<16x1xf32>
    %39 = math.rsqrt %38 : vector<16x1xf32>
    %40 = arith.mulf %22, %39 : vector<16x1xf32>
    %41 = arith.mulf %32, %40 : vector<16x1xf32>
    %42 = arith.subf %23, %41 : vector<16x1xf32>
    %43 = vector.broadcast %40 : vector<16x1xf32> to vector<16x256xf32>
    %44 = arith.mulf %21, %43 : vector<16x256xf32>
    %45 = vector.broadcast %42 : vector<16x1xf32> to vector<16x256xf32>
    %46 = arith.addf %44, %45 : vector<16x256xf32>
    %47 = vector.extract_strided_slice %46 {offsets = [0, 0], sizes = [8, 256], strides = [1, 1]} : vector<16x256xf32> to vector<8x256xf32>
    %cst_14 = arith.constant 0.000000e+00 : f32
    %48 = vector.broadcast %cst_14 : f32 to vector<8x256xf32>
    %49 = arith.cmpf ogt, %47, %48 : vector<8x256xf32>
    %cst_15 = arith.constant 0.000000e+00 : f32
    %50 = vector.broadcast %cst_15 : f32 to vector<8x256xf32>
    %51 = arith.minimumf %47, %50 : vector<8x256xf32>
    %52 = math.exp %51 : vector<8x256xf32>
    %cst_16 = arith.constant 1.000000e+00 : f32
    %53 = vector.broadcast %cst_16 : f32 to vector<8x256xf32>
    %54 = arith.subf %52, %53 : vector<8x256xf32>
    %55 = arith.select %49, %47, %54 : vector<8x256xi1>, vector<8x256xf32>
    %56 = vector.broadcast %1 : vector<1x256xf32> to vector<8x256xf32>
    %57 = arith.mulf %55, %56 : vector<8x256xf32>
    %58 = vector.extract_strided_slice %46 {offsets = [8, 0], sizes = [8, 256], strides = [1, 1]} : vector<16x256xf32> to vector<8x256xf32>
    %c4_i32_17 = arith.constant 4 : i32
    %59 = tpu.dynamic_rotate %57 by %c4_i32_17 dim 1 : vector<8x256xf32>, i32 -> vector<8x256xf32>
    %60 = vector.extract_strided_slice %2 {offsets = [16, 0], sizes = [8, 8], strides = [1, 1]} : vector<24x40xf32> to vector<8x8xf32>
    %cst_18 = arith.constant dense<0.000000e+00> : vector<8x256xf32>
    %61 = tpu.matmul %60, %59, %cst_18 {dimension_numbers = #tpu.dot_dimension_numbers<[1], [0], [0], [1], [0, 0, 1, 1], [], []>} : vector<8x8xf32>, vector<8x256xf32>, vector<8x256xf32> -> vector<8x256xf32>
    %c2_i32_19 = arith.constant 2 : i32
    %62 = tpu.dynamic_rotate %57 by %c2_i32_19 dim 1 : vector<8x256xf32>, i32 -> vector<8x256xf32>
    %63 = vector.extract_strided_slice %2 {offsets = [16, 8], sizes = [8, 8], strides = [1, 1]} : vector<24x40xf32> to vector<8x8xf32>
    %cst_20 = arith.constant dense<0.000000e+00> : vector<8x256xf32>
    %64 = tpu.matmul %63, %62, %cst_20 {dimension_numbers = #tpu.dot_dimension_numbers<[1], [0], [0], [1], [0, 0, 1, 1], [], []>} : vector<8x8xf32>, vector<8x256xf32>, vector<8x256xf32> -> vector<8x256xf32>
    %65 = arith.addf %61, %64 : vector<8x256xf32>
    %66 = vector.extract_strided_slice %2 {offsets = [16, 16], sizes = [8, 8], strides = [1, 1]} : vector<24x40xf32> to vector<8x8xf32>
    %cst_21 = arith.constant dense<0.000000e+00> : vector<8x256xf32>
    %67 = tpu.matmul %66, %57, %cst_21 {dimension_numbers = #tpu.dot_dimension_numbers<[1], [0], [0], [1], [0, 0, 1, 1], [], []>} : vector<8x8xf32>, vector<8x256xf32>, vector<8x256xf32> -> vector<8x256xf32>
    %68 = arith.addf %65, %67 : vector<8x256xf32>
    %c254_i32_22 = arith.constant 254 : i32
    %69 = tpu.dynamic_rotate %57 by %c254_i32_22 dim 1 : vector<8x256xf32>, i32 -> vector<8x256xf32>
    %70 = vector.extract_strided_slice %2 {offsets = [16, 24], sizes = [8, 8], strides = [1, 1]} : vector<24x40xf32> to vector<8x8xf32>
    %cst_23 = arith.constant dense<0.000000e+00> : vector<8x256xf32>
    %71 = tpu.matmul %70, %69, %cst_23 {dimension_numbers = #tpu.dot_dimension_numbers<[1], [0], [0], [1], [0, 0, 1, 1], [], []>} : vector<8x8xf32>, vector<8x256xf32>, vector<8x256xf32> -> vector<8x256xf32>
    %72 = arith.addf %68, %71 : vector<8x256xf32>
    %c252_i32_24 = arith.constant 252 : i32
    %73 = tpu.dynamic_rotate %57 by %c252_i32_24 dim 1 : vector<8x256xf32>, i32 -> vector<8x256xf32>
    %74 = vector.extract_strided_slice %2 {offsets = [16, 32], sizes = [8, 8], strides = [1, 1]} : vector<24x40xf32> to vector<8x8xf32>
    %cst_25 = arith.constant dense<0.000000e+00> : vector<8x256xf32>
    %75 = tpu.matmul %74, %73, %cst_25 {dimension_numbers = #tpu.dot_dimension_numbers<[1], [0], [0], [1], [0, 0, 1, 1], [], []>} : vector<8x8xf32>, vector<8x256xf32>, vector<8x256xf32> -> vector<8x256xf32>
    %76 = arith.addf %72, %75 : vector<8x256xf32>
    %77 = vector.extract_strided_slice %3 {offsets = [0, 2], sizes = [8, 1], strides = [1, 1]} : vector<16x4xf32> to vector<8x1xf32>
    %78 = vector.extract_strided_slice %3 {offsets = [0, 3], sizes = [8, 1], strides = [1, 1]} : vector<16x4xf32> to vector<8x1xf32>
    %79 = vector.broadcast %1 : vector<1x256xf32> to vector<8x256xf32>
    %80 = arith.mulf %76, %79 : vector<8x256xf32>
    %cst_26 = arith.constant dense<0.000000e+00> : vector<8xf32>
    %81 = vector.multi_reduction <add>, %80, %cst_26 [1] : vector<8x256xf32> to vector<8xf32>
    %82 = vector.shape_cast %81 : vector<8xf32> to vector<8x1xf32>
    %83 = arith.mulf %80, %76 : vector<8x256xf32>
    %cst_27 = arith.constant dense<0.000000e+00> : vector<8xf32>
    %84 = vector.multi_reduction <add>, %83, %cst_27 [1] : vector<8x256xf32> to vector<8xf32>
    %85 = vector.shape_cast %84 : vector<8xf32> to vector<8x1xf32>
    %cst_28 = arith.constant 3.125000e-02 : f32
    %86 = vector.broadcast %cst_28 : f32 to vector<8x1xf32>
    %87 = arith.mulf %82, %86 : vector<8x1xf32>
    %cst_29 = arith.constant 3.125000e-02 : f32
    %88 = vector.broadcast %cst_29 : f32 to vector<8x1xf32>
    %89 = arith.mulf %85, %88 : vector<8x1xf32>
    %90 = arith.mulf %87, %87 : vector<8x1xf32>
    %91 = arith.subf %89, %90 : vector<8x1xf32>
    %cst_30 = arith.constant 9.99999974E-6 : f32
    %92 = vector.broadcast %cst_30 : f32 to vector<8x1xf32>
    %93 = arith.addf %91, %92 : vector<8x1xf32>
    %94 = math.rsqrt %93 : vector<8x1xf32>
    %95 = arith.mulf %77, %94 : vector<8x1xf32>
    %96 = arith.mulf %87, %95 : vector<8x1xf32>
    %97 = arith.subf %78, %96 : vector<8x1xf32>
    %98 = vector.broadcast %95 : vector<8x1xf32> to vector<8x256xf32>
    %99 = arith.mulf %76, %98 : vector<8x256xf32>
    %100 = vector.broadcast %97 : vector<8x1xf32> to vector<8x256xf32>
    %101 = arith.addf %99, %100 : vector<8x256xf32>
    %102 = arith.addf %101, %58 : vector<8x256xf32>
    %cst_31 = arith.constant 0.000000e+00 : f32
    %103 = vector.broadcast %cst_31 : f32 to vector<8x256xf32>
    %104 = arith.cmpf ogt, %102, %103 : vector<8x256xf32>
    %cst_32 = arith.constant 0.000000e+00 : f32
    %105 = vector.broadcast %cst_32 : f32 to vector<8x256xf32>
    %106 = arith.minimumf %102, %105 : vector<8x256xf32>
    %107 = math.exp %106 : vector<8x256xf32>
    %cst_33 = arith.constant 1.000000e+00 : f32
    %108 = vector.broadcast %cst_33 : f32 to vector<8x256xf32>
    %109 = arith.subf %107, %108 : vector<8x256xf32>
    %110 = arith.select %104, %102, %109 : vector<8x256xi1>, vector<8x256xf32>
    %c0_34 = arith.constant 0 : index
    %c0_35 = arith.constant 0 : index
    %111 = vector.load %arg3[%c0_34, %c0_35] : memref<8x256xf32, #tpu.memory_space<vmem>>, vector<8x256xf32>
    tpu.vector_store %arg3[%c0_34, %c0_35], %110 {strides = array<i32>} : memref<8x256xf32, #tpu.memory_space<vmem>>, vector<8x256xf32>,
    return
  }
}

</mosaic_0001>

<llo_original>
// kernel: tpu_custom_call.1
$region0: #{tpu_custom_call.1}
  #allocation0 [shape = 'u32[]', space=smem, size = 0x4, offset = 0x4, fixed_abs, tag = 'smem constant byte address 0x4 - core index']
  #allocation1 [shape = 'u32[144,128]{1,0:T(1,128)}', space=vmem, size = 0x12000, scoped, tag = 'internal scratch']
  %s0 = inlined_call_operand.hbm [shape: f32[8,256], index: 0, kind: input, shape index: {}]
  %s1 = inlined_call_operand.hbm [shape: f32[24,40], index: 1, kind: input, shape index: {}]
  %s2 = inlined_call_operand.hbm [shape: f32[16,4], index: 2, kind: input, shape index: {}]
  %s3 = inlined_call_operand.hbm [shape: f32[8,256], index: 3, kind: output, shape index: {}]
  %s4 = sld [smem:[#allocation0]]
  $region34: #{tpu_custom_call.1} parent=0
    _
  %s6 = ssub.s32 1, %s4
  %s7 = scalar_select 0, %s6, %s4
  $region1: #{tpu_custom_call.1} parent=0
    #allocation2 [shape = 'u8[8192]{0}', space=vmem, size = 0x2000, scoped, tag = 'input window, operand 0, single buffered']
    #allocation3 [shape = 's32[1]{0}', space=sflag, size = 0x4, scoped, tag = 'scoped memory for tpu_custom_call.1']
    #allocation4 [shape = 's32[1]{0}', space=sflag, size = 0x4, scoped, tag = 'scoped memory for tpu_custom_call.1']
    #allocation5 [shape = 'u8[12288]{0}', space=vmem, size = 0x3000, scoped, tag = 'input window, operand 1, single buffered']
    #allocation6 [shape = 's32[1]{0}', space=sflag, size = 0x4, scoped, tag = 'scoped memory for tpu_custom_call.1']
    #allocation7 [shape = 'u8[8192]{0}', space=vmem, size = 0x2000, scoped, tag = 'input window, operand 2, single buffered']
    #allocation8 [shape = 'u8[8192]{0}', space=vmem, size = 0x2000, scoped, tag = 'output window, operand 0, single buffered']
    %8 = vsyncpa [#allocation3], 0
    %9 = vsyncpa [#allocation6], 0
    %10 = vsyncpa [#allocation4], 0
    // Predicated region
    $region2: #{tpu_custom_call.1} parent=1 // pred_check
      _
    $region3: #{tpu_custom_call.1} parent=1 // pred_check_branch
      %12 = sbr.rel (0) target = $region5
    $region4: #{tpu_custom_call.1} parent=1 // pred_region
      %s14 = ssub.s32 256, 256
      %15 = vsyncadd [#allocation3], %s14
      %s17 = sshll.u32 [#allocation2], 4
      %s18 = int_to_ptr.vmem [resolvable:$true] %s17
      %20 = dma.hbm_to_vmem [thread:$0]  %s0, 256, %s18, [#allocation3]
    $region5: #{tpu_custom_call.1} parent=1 // pred_fallthru
      _
    // Predicated region
    $region6: #{tpu_custom_call.1} parent=1 // pred_check
      _
    $region7: #{tpu_custom_call.1} parent=1 // pred_check_branch
      %22 = sbr.rel (0) target = $region9
    $region8: #{tpu_custom_call.1} parent=1 // pred_region
      %s24 = ssub.s32 384, 384
      %25 = vsyncadd [#allocation6], %s24
      %s26 = sshll.u32 [#allocation5], 4
      %s27 = int_to_ptr.vmem [resolvable:$true] %s26
      %32 = dma.hbm_to_vmem [thread:$0]  %s1, 384, %s27, [#allocation6], 128, 128, 8
    $region9: #{tpu_custom_call.1} parent=1 // pred_fallthru
      _
    // Predicated region
    $region10: #{tpu_custom_call.1} parent=1 // pred_check
      _
    $region11: #{tpu_custom_call.1} parent=1 // pred_check_branch
      %34 = sbr.rel (0) target = $region13
    $region12: #{tpu_custom_call.1} parent=1 // pred_region
      %s36 = ssub.s32 256, 256
      %37 = vsyncadd [#allocation6], %s36
      %s38 = sshll.u32 [#allocation7], 4
      %s39 = int_to_ptr.vmem [resolvable:$true] %s38
      %44 = dma.hbm_to_vmem [thread:$0]  %s2, 256, %s39, [#allocation6], 128, 128, 8
    $region13: #{tpu_custom_call.1} parent=1 // pred_fallthru
      _
    // Predicated region
    $region14: #{tpu_custom_call.1} parent=1 // pred_check
      _
    $region15: #{tpu_custom_call.1} parent=1 // pred_check_branch
      %46 = sbr.rel (0) target = $region17
    $region16: #{tpu_custom_call.1} parent=1 // pred_region
      %47 = dma.done [#allocation3], 256
    $region17: #{tpu_custom_call.1} parent=1 // pred_fallthru
      _
    // Predicated region
    $region18: #{tpu_custom_call.1} parent=1 // pred_check
      _
    $region19: #{tpu_custom_call.1} parent=1 // pred_check_branch
      %49 = sbr.rel (0) target = $region21
    $region20: #{tpu_custom_call.1} parent=1 // pred_region
      %50 = dma.done [#allocation6], 384
    $region21: #{tpu_custom_call.1} parent=1 // pred_fallthru
      _
    // Predicated region
    $region22: #{tpu_custom_call.1} parent=1 // pred_check
      _
    $region23: #{tpu_custom_call.1} parent=1 // pred_check_branch
      %52 = sbr.rel (0) target = $region25
    $region24: #{tpu_custom_call.1} parent=1 // pred_region
      %53 = dma.done [#allocation6], 256
    $region25: #{tpu_custom_call.1} parent=1 // pred_fallthru
      _
    %v54 = vld [vmem:[#allocation2] sm:$0xff]
    %v55 = vld [vmem:[#allocation2 + $0x8] sm:$0xff]
    %v56 = vld [vmem:[#allocation5] sm:$0xff]
    %v57 = vld [vmem:[#allocation5 + $0x8] sm:$0xff]
    %v58 = vld [vmem:[#allocation5 + $0x10] sm:$0xff]
    %v59 = vld [vmem:[#allocation7] sm:$0xff]
    %v60 = vld [vmem:[#allocation7 + $0x8] sm:$0xff]
    %61 = vrot.lane.b32.xlu0 %v54, 4
    %v62 = vpop.permute.xlu0 %61
    %63 = vrot.lane.b32.xlu0 %v55, 4
    %v64 = vpop.permute.xlu0 %63
    %v65 = vlaneseq
    %v66 = vand.u32 %v65, 127
    %vm67 = vcmp.lt.s32.totalorder %v66, 4
    %v68 = vsel %vm67, %v62, %v64
    %v69 = vsel %vm67, %v64, %v62
    %70 = vrot.lane.b32.xlu0 %v54, 2
    %v71 = vpop.permute.xlu0 %70
    %72 = vrot.lane.b32.xlu0 %v55, 2
    %v73 = vpop.permute.xlu0 %72
    %vm74 = vcmp.lt.s32.totalorder %v66, 2
    %v75 = vsel %vm74, %v71, %v73
    %v76 = vsel %vm74, %v73, %v71
    %79 = vrot.lane.b32.xlu0 %v56, 120
    %v80 = vpop.permute.xlu0 %79
    %81 = vrot.lane.b32.xlu0 %v57, 120
    %v82 = vpop.permute.xlu0 %81
    %vm83 = vcmask 64512
    %v84 = vsel %vm83, %v80, 0
    %v86 = vsel %vm83, %v82, 0
    %88 = vmatprep.subr.mxu0 %v75
    %89 = vmatpush1.msra.mxu0 %v76
    %90 = vmatprep.subr.mxu0 0.0
    %91 = vmatpush1.msra.mxu0 0.0
    %92 = vmatprep.subr.mxu0 0.0
    %93 = vmatpush1.msra.mxu0 0.0
    %94 = vmatprep.subr.mxu0 0.0
    %95 = vmatpush1.msra.mxu0 0.0
    %96 = vmatprep.subr.mxu0 0.0
    %97 = vmatpush1.msra.mxu0 0.0
    %98 = vmatprep.subr.mxu0 0.0
    %99 = vmatpush1.msra.mxu0 0.0
    %100 = vmatprep.subr.mxu0 0.0
    %101 = vmatpush1.msra.mxu0 0.0
    %102 = vmatprep.subr.mxu0 0.0
    %103 = vmatpush1.msra.mxu0 0.0
    %104 = vmatprep.subr.mxu0 0.0
    %105 = vmatpush1.msra.mxu0 0.0
    %106 = vmatprep.subr.mxu0 0.0
    %107 = vmatpush1.msra.mxu0 0.0
    %108 = vmatprep.subr.mxu0 0.0
    %109 = vmatpush1.msra.mxu0 0.0
    %110 = vmatprep.subr.mxu0 0.0
    %111 = vmatpush1.msra.mxu0 0.0
    %112 = vmatprep.subr.mxu0 0.0
    %113 = vmatpush1.msra.mxu0 0.0
    %114 = vmatprep.subr.mxu0 0.0
    %115 = vmatpush1.msra.mxu0 0.0
    %116 = vmatprep.subr.mxu0 0.0
    %117 = vmatpush1.msra.mxu0 0.0
    %118 = vmatprep.subr.mxu0 0.0
    %119 = vmatpush1.msra.mxu0 0.0
    %120 = vmatprep.subr.mxu0 0.0
    %121 = vmatpush1.msra.mxu0 0.0
    %122 = vmatprep.subr.mxu0 0.0
    %123 = vmatpush1.msra.mxu0 0.0
    %124 = vmatprep.subr.mxu0 0.0
    %125 = vmatpush1.msra.mxu0 0.0
    %126 = vmatprep.subr.mxu0 0.0
    %127 = vmatpush1.msra.mxu0 0.0
    %128 = vmatprep.subr.mxu0 0.0
    %129 = vmatpush1.msra.mxu0 0.0
    %130 = vmatprep.subr.mxu0 0.0
    %131 = vmatpush1.msra.mxu0 0.0
    %132 = vmatprep.subr.mxu0 0.0
    %133 = vmatpush1.msra.mxu0 0.0
    %134 = vmatprep.subr.mxu0 0.0
    %135 = vmatpush1.msra.mxu0 0.0
    %136 = vmatprep.subr.mxu0 0.0
    %137 = vmatpush1.msra.mxu0 0.0
    %138 = vmatprep.subr.mxu0 0.0
    %139 = vmatpush1.msra.mxu0 0.0
    %140 = vmatprep.subr.mxu0 0.0
    %141 = vmatpush1.msra.mxu0 0.0
    %142 = vmatprep.subr.mxu0 0.0
    %143 = vmatpush1.msra.mxu0 0.0
    %144 = vmatprep.subr.mxu0 0.0
    %145 = vmatpush1.msra.mxu0 0.0
    %146 = vmatprep.subr.mxu0 0.0
    %147 = vmatpush1.msra.mxu0 0.0
    %148 = vmatprep.subr.mxu0 0.0
    %149 = vmatpush1.msra.mxu0 0.0
    %150 = vmatprep.subr.mxu0 0.0
    %151 = vmatpush1.msra.mxu0 0.0
    %152 = vmatprep.mubr.f32.mxu0 0.0
    %153 = vmatmul.mubr.f32.gmra.mrb[0].mxu0 %v84
    %v154 = vpop.f32.mrb[0].mxu0
    %v155 = vadd.f32 0.0, %v154
    %v156 = vpop.f32.mrb[0].mxu0
    %v157 = vadd.f32 0.0, %v156
    %158 = vmatprep.mubr.f32.mxu0 0.0
    %159 = vmatmul.mubr.f32.gmra.mrb[0].mxu0 %v86
    %v160 = vpop.f32.mrb[0].mxu0
    %v161 = vadd.f32 0.0, %v160
    %v162 = vpop.f32.mrb[0].mxu0
    %v163 = vadd.f32 0.0, %v162
    %164 = vdwg.mxu0
    %v165 = vsel %vm83, %v56, 0
    %v167 = vsel %vm83, %v57, 0
    %169 = vmatprep.subr.mxu0 %v68
    %170 = vmatpush1.msra.mxu0 %v69
    %171 = vmatprep.subr.mxu0 0.0
    %172 = vmatpush1.msra.mxu0 0.0
    %173 = vmatprep.subr.mxu0 0.0
    %174 = vmatpush1.msra.mxu0 0.0
    %175 = vmatprep.subr.mxu0 0.0
    %176 = vmatpush1.msra.mxu0 0.0
    %177 = vmatprep.subr.mxu0 0.0
    %178 = vmatpush1.msra.mxu0 0.0
    %179 = vmatprep.subr.mxu0 0.0
    %180 = vmatpush1.msra.mxu0 0.0
    %181 = vmatprep.subr.mxu0 0.0
    %182 = vmatpush1.msra.mxu0 0.0
    %183 = vmatprep.subr.mxu0 0.0
    %184 = vmatpush1.msra.mxu0 0.0
    %185 = vmatprep.subr.mxu0 0.0
    %186 = vmatpush1.msra.mxu0 0.0
    %187 = vmatprep.subr.mxu0 0.0
    %188 = vmatpush1.msra.mxu0 0.0
    %189 = vmatprep.subr.mxu0 0.0
    %190 = vmatpush1.msra.mxu0 0.0
    %191 = vmatprep.subr.mxu0 0.0
    %192 = vmatpush1.msra.mxu0 0.0
    %193 = vmatprep.subr.mxu0 0.0
    %194 = vmatpush1.msra.mxu0 0.0
    %195 = vmatprep.subr.mxu0 0.0
    %196 = vmatpush1.msra.mxu0 0.0
    %197 = vmatprep.subr.mxu0 0.0
    %198 = vmatpush1.msra.mxu0 0.0
    %199 = vmatprep.subr.mxu0 0.0
    %200 = vmatpush1.msra.mxu0 0.0
    %201 = vmatprep.subr.mxu0 0.0
    %202 = vmatpush1.msra.mxu0 0.0
    %203 = vmatprep.subr.mxu0 0.0
    %204 = vmatpush1.msra.mxu0 0.0
    %205 = vmatprep.subr.mxu0 0.0
    %206 = vmatpush1.msra.mxu0 0.0
    %207 = vmatprep.subr.mxu0 0.0
    %208 = vmatpush1.msra.mxu0 0.0
    %209 = vmatprep.subr.mxu0 0.0
    %210 = vmatpush1.msra.mxu0 0.0
    %211 = vmatprep.subr.mxu0 0.0
    %212 = vmatpush1.msra.mxu0 0.0
    %213 = vmatprep.subr.mxu0 0.0
    %214 = vmatpush1.msra.mxu0 0.0
    %215 = vmatprep.subr.mxu0 0.0
    %216 = vmatpush1.msra.mxu0 0.0
    %217 = vmatprep.subr.mxu0 0.0
    %218 = vmatpush1.msra.mxu0 0.0
    %219 = vmatprep.subr.mxu0 0.0
    %220 = vmatpush1.msra.mxu0 0.0
    %221 = vmatprep.subr.mxu0 0.0
    %222 = vmatpush1.msra.mxu0 0.0
    %223 = vmatprep.subr.mxu0 0.0
    %224 = vmatpush1.msra.mxu0 0.0
    %225 = vmatprep.subr.mxu0 0.0
    %226 = vmatpush1.msra.mxu0 0.0
    %227 = vmatprep.subr.mxu0 0.0
    %228 = vmatpush1.msra.mxu0 0.0
    %229 = vmatprep.subr.mxu0 0.0
    %230 = vmatpush1.msra.mxu0 0.0
    %231 = vmatprep.subr.mxu0 0.0
    %232 = vmatpush1.msra.mxu0 0.0
    %233 = vmatprep.mubr.f32.mxu0 0.0
    %234 = vmatmul.mubr.f32.gmra.mrb[0].mxu0 %v165
    %v235 = vpop.f32.mrb[0].mxu0
    %v236 = vadd.f32 %v155, %v235
    %v237 = vpop.f32.mrb[0].mxu0
    %v238 = vadd.f32 %v157, %v237
    %239 = vmatprep.mubr.f32.mxu0 0.0
    %240 = vmatmul.mubr.f32.gmra.mrb[0].mxu0 %v167
    %v241 = vpop.f32.mrb[0].mxu0
    %v242 = vadd.f32 %v161, %v241
    %v243 = vpop.f32.mrb[0].mxu0
    %v244 = vadd.f32 %v163, %v243
    %245 = vdwg.mxu0
    %246 = vrot.lane.b32.xlu0 %v56, 112
    %v247 = vpop.permute.xlu0 %246
    %248 = vrot.lane.b32.xlu0 %v57, 112
    %v249 = vpop.permute.xlu0 %248
    %v250 = vsel %vm83, %v247, 0
    %v252 = vsel %vm83, %v249, 0
    %254 = vmatprep.subr.mxu0 %v55
    %255 = vmatpush1.msra.mxu0 %v54
    %256 = vmatprep.subr.mxu0 0.0
    %257 = vmatpush1.msra.mxu0 0.0
    %258 = vmatprep.subr.mxu0 0.0
    %259 = vmatpush1.msra.mxu0 0.0
    %260 = vmatprep.subr.mxu0 0.0
    %261 = vmatpush1.msra.mxu0 0.0
    %262 = vmatprep.subr.mxu0 0.0
    %263 = vmatpush1.msra.mxu0 0.0
    %264 = vmatprep.subr.mxu0 0.0
    %265 = vmatpush1.msra.mxu0 0.0
    %266 = vmatprep.subr.mxu0 0.0
    %267 = vmatpush1.msra.mxu0 0.0
    %268 = vmatprep.subr.mxu0 0.0
    %269 = vmatpush1.msra.mxu0 0.0
    %270 = vmatprep.subr.mxu0 0.0
    %271 = vmatpush1.msra.mxu0 0.0
    %272 = vmatprep.subr.mxu0 0.0
    %273 = vmatpush1.msra.mxu0 0.0
    %274 = vmatprep.subr.mxu0 0.0
    %275 = vmatpush1.msra.mxu0 0.0
    %276 = vmatprep.subr.mxu0 0.0
    %277 = vmatpush1.msra.mxu0 0.0
    %278 = vmatprep.subr.mxu0 0.0
    %279 = vmatpush1.msra.mxu0 0.0
    %280 = vmatprep.subr.mxu0 0.0
    %281 = vmatpush1.msra.mxu0 0.0
    %282 = vmatprep.subr.mxu0 0.0
    %283 = vmatpush1.msra.mxu0 0.0
    %284 = vmatprep.subr.mxu0 0.0
    %285 = vmatpush1.msra.mxu0 0.0
    %286 = vmatprep.subr.mxu0 0.0
    %287 = vmatpush1.msra.mxu0 0.0
    %288 = vmatprep.subr.mxu0 0.0
    %289 = vmatpush1.msra.mxu0 0.0
    %290 = vmatprep.subr.mxu0 0.0
    %291 = vmatpush1.msra.mxu0 0.0
    %292 = vmatprep.subr.mxu0 0.0
    %293 = vmatpush1.msra.mxu0 0.0
    %294 = vmatprep.subr.mxu0 0.0
    %295 = vmatpush1.msra.mxu0 0.0
    %296 = vmatprep.subr.mxu0 0.0
    %297 = vmatpush1.msra.mxu0 0.0
    %298 = vmatprep.subr.mxu0 0.0
    %299 = vmatpush1.msra.mxu0 0.0
    %300 = vmatprep.subr.mxu0 0.0
    %301 = vmatpush1.msra.mxu0 0.0
    %302 = vmatprep.subr.mxu0 0.0
    %303 = vmatpush1.msra.mxu0 0.0
    %304 = vmatprep.subr.mxu0 0.0
    %305 = vmatpush1.msra.mxu0 0.0
    %306 = vmatprep.subr.mxu0 0.0
    %307 = vmatpush1.msra.mxu0 0.0
    %308 = vmatprep.subr.mxu0 0.0
    %309 = vmatpush1.msra.mxu0 0.0
    %310 = vmatprep.subr.mxu0 0.0
    %311 = vmatpush1.msra.mxu0 0.0
    %312 = vmatprep.subr.mxu0 0.0
    %313 = vmatpush1.msra.mxu0 0.0
    %314 = vmatprep.subr.mxu0 0.0
    %315 = vmatpush1.msra.mxu0 0.0
    %316 = vmatprep.subr.mxu0 0.0
    %317 = vmatpush1.msra.mxu0 0.0
    %318 = vmatprep.mubr.f32.mxu0 0.0
    %319 = vmatmul.mubr.f32.gmra.mrb[0].mxu0 %v250
    %v320 = vpop.f32.mrb[0].mxu0
    %v321 = vadd.f32 0.0, %v320
    %v322 = vpop.f32.mrb[0].mxu0
    %v323 = vadd.f32 0.0, %v322
    %324 = vmatprep.mubr.f32.mxu0 0.0
    %325 = vmatmul.mubr.f32.gmra.mrb[0].mxu0 %v252
    %v326 = vpop.f32.mrb[0].mxu0
    %v327 = vadd.f32 0.0, %v326
    %v328 = vpop.f32.mrb[0].mxu0
    %v329 = vadd.f32 0.0, %v328
    %330 = vdwg.mxu0
    %v331 = vadd.f32 %v236, %v321
    %v332 = vadd.f32 %v238, %v323
    %v333 = vadd.f32 %v242, %v327
    %v334 = vadd.f32 %v244, %v329
    %335 = vrot.lane.b32.xlu0 %v54, 126
    %v336 = vpop.permute.xlu0 %335
    %337 = vrot.lane.b32.xlu0 %v55, 126
    %v338 = vpop.permute.xlu0 %337
    %vm339 = vcmp.lt.s32.totalorder %v66, 126
    %v340 = vsel %vm339, %v336, %v338
    %v341 = vsel %vm339, %v338, %v336
    %342 = vrot.lane.b32.xlu0 %v56, 104
    %v343 = vpop.permute.xlu0 %342
    %344 = vrot.lane.b32.xlu0 %v57, 104
    %v345 = vpop.permute.xlu0 %344
    %v346 = vsel %vm83, %v343, 0
    %v348 = vsel %vm83, %v345, 0
    %350 = vmatprep.subr.mxu0 %v341
    %351 = vmatpush1.msra.mxu0 %v340
    %352 = vmatprep.subr.mxu0 0.0
    %353 = vmatpush1.msra.mxu0 0.0
    %354 = vmatprep.subr.mxu0 0.0
    %355 = vmatpush1.msra.mxu0 0.0
    %356 = vmatprep.subr.mxu0 0.0
    %357 = vmatpush1.msra.mxu0 0.0
    %358 = vmatprep.subr.mxu0 0.0
    %359 = vmatpush1.msra.mxu0 0.0
    %360 = vmatprep.subr.mxu0 0.0
    %361 = vmatpush1.msra.mxu0 0.0
    %362 = vmatprep.subr.mxu0 0.0
    %363 = vmatpush1.msra.mxu0 0.0
    %364 = vmatprep.subr.mxu0 0.0
    %365 = vmatpush1.msra.mxu0 0.0
    %366 = vmatprep.subr.mxu0 0.0
    %367 = vmatpush1.msra.mxu0 0.0
    %368 = vmatprep.subr.mxu0 0.0
    %369 = vmatpush1.msra.mxu0 0.0
    %370 = vmatprep.subr.mxu0 0.0
    %371 = vmatpush1.msra.mxu0 0.0
    %372 = vmatprep.subr.mxu0 0.0
    %373 = vmatpush1.msra.mxu0 0.0
    %374 = vmatprep.subr.mxu0 0.0
    %375 = vmatpush1.msra.mxu0 0.0
    %376 = vmatprep.subr.mxu0 0.0
    %377 = vmatpush1.msra.mxu0 0.0
    %378 = vmatprep.subr.mxu0 0.0
    %379 = vmatpush1.msra.mxu0 0.0
    %380 = vmatprep.subr.mxu0 0.0
    %381 = vmatpush1.msra.mxu0 0.0
    %382 = vmatprep.subr.mxu0 0.0
    %383 = vmatpush1.msra.mxu0 0.0
    %384 = vmatprep.subr.mxu0 0.0
    %385 = vmatpush1.msra.mxu0 0.0
    %386 = vmatprep.subr.mxu0 0.0
    %387 = vmatpush1.msra.mxu0 0.0
    %388 = vmatprep.subr.mxu0 0.0
    %389 = vmatpush1.msra.mxu0 0.0
    %390 = vmatprep.subr.mxu0 0.0
    %391 = vmatpush1.msra.mxu0 0.0
    %392 = vmatprep.subr.mxu0 0.0
    %393 = vmatpush1.msra.mxu0 0.0
    %394 = vmatprep.subr.mxu0 0.0
    %395 = vmatpush1.msra.mxu0 0.0
    %396 = vmatprep.subr.mxu0 0.0
    %397 = vmatpush1.msra.mxu0 0.0
    %398 = vmatprep.subr.mxu0 0.0
    %399 = vmatpush1.msra.mxu0 0.0
    %400 = vmatprep.subr.mxu0 0.0
    %401 = vmatpush1.msra.mxu0 0.0
    %402 = vmatprep.subr.mxu0 0.0
    %403 = vmatpush1.msra.mxu0 0.0
    %404 = vmatprep.subr.mxu0 0.0
    %405 = vmatpush1.msra.mxu0 0.0
    %406 = vmatprep.subr.mxu0 0.0
    %407 = vmatpush1.msra.mxu0 0.0
    %408 = vmatprep.subr.mxu0 0.0
    %409 = vmatpush1.msra.mxu0 0.0
    %410 = vmatprep.subr.mxu0 0.0
    %411 = vmatpush1.msra.mxu0 0.0
    %412 = vmatprep.subr.mxu0 0.0
    %413 = vmatpush1.msra.mxu0 0.0
    %414 = vmatprep.mubr.f32.mxu0 0.0
    %415 = vmatmul.mubr.f32.gmra.mrb[0].mxu0 %v346
    %v416 = vpop.f32.mrb[0].mxu0
    %v417 = vadd.f32 0.0, %v416
    %v418 = vpop.f32.mrb[0].mxu0
    %v419 = vadd.f32 0.0, %v418
    %420 = vmatprep.mubr.f32.mxu0 0.0
    %421 = vmatmul.mubr.f32.gmra.mrb[0].mxu0 %v348
    %v422 = vpop.f32.mrb[0].mxu0
    %v423 = vadd.f32 0.0, %v422
    %v424 = vpop.f32.mrb[0].mxu0
    %v425 = vadd.f32 0.0, %v424
    %426 = vdwg.mxu0
    %v427 = vadd.f32 %v331, %v417
    %v428 = vadd.f32 %v332, %v419
    %v429 = vadd.f32 %v333, %v423
    %v430 = vadd.f32 %v334, %v425
    %431 = vrot.lane.b32.xlu0 %v54, 124
    %v432 = vpop.permute.xlu0 %431
    %433 = vrot.lane.b32.xlu0 %v55, 124
    %v434 = vpop.permute.xlu0 %433
    %vm435 = vcmp.lt.s32.totalorder %v66, 124
    %v436 = vsel %vm435, %v432, %v434
    %v437 = vsel %vm435, %v434, %v432
    %438 = vrot.lane.b32.xlu0 %v56, 96
    %v439 = vpop.permute.xlu0 %438
    %440 = vrot.lane.b32.xlu0 %v57, 96
    %v441 = vpop.permute.xlu0 %440
    %v442 = vsel %vm83, %v439, 0
    %v444 = vsel %vm83, %v441, 0
    %446 = vmatprep.subr.mxu0 %v437
    %447 = vmatpush1.msra.mxu0 %v436
    %448 = vmatprep.subr.mxu0 0.0
    %449 = vmatpush1.msra.mxu0 0.0
    %450 = vmatprep.subr.mxu0 0.0
    %451 = vmatpush1.msra.mxu0 0.0
    %452 = vmatprep.subr.mxu0 0.0
    %453 = vmatpush1.msra.mxu0 0.0
    %454 = vmatprep.subr.mxu0 0.0
    %455 = vmatpush1.msra.mxu0 0.0
    %456 = vmatprep.subr.mxu0 0.0
    %457 = vmatpush1.msra.mxu0 0.0
    %458 = vmatprep.subr.mxu0 0.0
    %459 = vmatpush1.msra.mxu0 0.0
    %460 = vmatprep.subr.mxu0 0.0
    %461 = vmatpush1.msra.mxu0 0.0
    %462 = vmatprep.subr.mxu0 0.0
    %463 = vmatpush1.msra.mxu0 0.0
    %464 = vmatprep.subr.mxu0 0.0
    %465 = vmatpush1.msra.mxu0 0.0
    %466 = vmatprep.subr.mxu0 0.0
    %467 = vmatpush1.msra.mxu0 0.0
    %468 = vmatprep.subr.mxu0 0.0
    %469 = vmatpush1.msra.mxu0 0.0
    %470 = vmatprep.subr.mxu0 0.0
    %471 = vmatpush1.msra.mxu0 0.0
    %472 = vmatprep.subr.mxu0 0.0
    %473 = vmatpush1.msra.mxu0 0.0
    %474 = vmatprep.subr.mxu0 0.0
    %475 = vmatpush1.msra.mxu0 0.0
    %476 = vmatprep.subr.mxu0 0.0
    %477 = vmatpush1.msra.mxu0 0.0
    %478 = vmatprep.subr.mxu0 0.0
    %479 = vmatpush1.msra.mxu0 0.0
    %480 = vmatprep.subr.mxu0 0.0
    %481 = vmatpush1.msra.mxu0 0.0
    %482 = vmatprep.subr.mxu0 0.0
    %483 = vmatpush1.msra.mxu0 0.0
    %484 = vmatprep.subr.mxu0 0.0
    %485 = vmatpush1.msra.mxu0 0.0
    %486 = vmatprep.subr.mxu0 0.0
    %487 = vmatpush1.msra.mxu0 0.0
    %488 = vmatprep.subr.mxu0 0.0
    %489 = vmatpush1.msra.mxu0 0.0
    %490 = vmatprep.subr.mxu0 0.0
    %491 = vmatpush1.msra.mxu0 0.0
    %492 = vmatprep.subr.mxu0 0.0
    %493 = vmatpush1.msra.mxu0 0.0
    %494 = vmatprep.subr.mxu0 0.0
    %495 = vmatpush1.msra.mxu0 0.0
    %496 = vmatprep.subr.mxu0 0.0
    %497 = vmatpush1.msra.mxu0 0.0
    %498 = vmatprep.subr.mxu0 0.0
    %499 = vmatpush1.msra.mxu0 0.0
    %500 = vmatprep.subr.mxu0 0.0
    %501 = vmatpush1.msra.mxu0 0.0
    %502 = vmatprep.subr.mxu0 0.0
    %503 = vmatpush1.msra.mxu0 0.0
    %504 = vmatprep.subr.mxu0 0.0
    %505 = vmatpush1.msra.mxu0 0.0
    %506 = vmatprep.subr.mxu0 0.0
    %507 = vmatpush1.msra.mxu0 0.0
    %508 = vmatprep.subr.mxu0 0.0
    %509 = vmatpush1.msra.mxu0 0.0
    %510 = vmatprep.mubr.f32.mxu0 0.0
    %511 = vmatmul.mubr.f32.gmra.mrb[0].mxu0 %v442
    %v512 = vpop.f32.mrb[0].mxu0
    %v513 = vadd.f32 0.0, %v512
    %v514 = vpop.f32.mrb[0].mxu0
    %v515 = vadd.f32 0.0, %v514
    %516 = vmatprep.mubr.f32.mxu0 0.0
    %517 = vmatmul.mubr.f32.gmra.mrb[0].mxu0 %v444
    %v518 = vpop.f32.mrb[0].mxu0
    %v519 = vadd.f32 0.0, %v518
    %v520 = vpop.f32.mrb[0].mxu0
    %v521 = vadd.f32 0.0, %v520
    %522 = vdwg.mxu0
    %v523 = vadd.f32 %v427, %v513
    %v524 = vadd.f32 %v428, %v515
    %v525 = vadd.f32 %v429, %v519
    %v526 = vadd.f32 %v430, %v521
    %v527 = vlaneseq
    %v528 = vshrl.u32 %v527, 7
    %v529 = vsub.s32 7, %v528
    %v530 = vrot.slane %v54, %v529
    %v531 = vlaneseq
    %v532 = vshrl.u32 %v531, 7
    %v533 = vsub.s32 7, %v532
    %v534 = vrot.slane %v55, %v533
    %v535 = vmul.f32 %v523, %v530
    %v536 = vmul.f32 %v524, %v534
    %v537 = vmul.f32 %v525, %v530
    %v538 = vmul.f32 %v526, %v534
    %v539 = vadd.f32 %v535, %v536
    %540 = vadd.xlane.f32.xlu0 %v539
    %v541 = vpop.xlane.xlu0 %540
    %v542 = vadd.f32 %v537, %v538
    %543 = vadd.xlane.f32.xlu0 %v542
    %v544 = vpop.xlane.xlu0 %543
    %v545 = vmul.f32 %v535, %v523
    %v546 = vmul.f32 %v536, %v524
    %v547 = vmul.f32 %v537, %v525
    %v548 = vmul.f32 %v538, %v526
    %v549 = vadd.f32 %v545, %v546
    %550 = vadd.xlane.f32.xlu0 %v549
    %v551 = vpop.xlane.xlu0 %550
    %v552 = vadd.f32 %v547, %v548
    %553 = vadd.xlane.f32.xlu0 %v552
    %v554 = vpop.xlane.xlu0 %553
    %v555 = vmul.f32 %v541, 0.03125
    %v556 = vmul.f32 %v544, 0.03125
    %v557 = vmul.f32 %v551, 0.03125
    %v558 = vmul.f32 %v554, 0.03125
    %v559 = vmul.f32 %v555, %v555
    %v560 = vmul.f32 %v556, %v556
    %v561 = vsub.f32 %v557, %v559
    %v562 = vsub.f32 %v558, %v560
    %v563 = vadd.f32 %v561, 1e-05
    %v564 = vadd.f32 %v562, 1e-05
    %v565 = vrsqrt.pop %v563
    %v566 = vrsqrt.pop %v564
    %v567 = vmul.f32 %v59, %v565
    %v568 = vmul.f32 %v60, %v566
    %v569 = vmul.f32 %v555, %v567
    %v570 = vmul.f32 %v556, %v568
    %573 = vrot.lane.b32.xlu0 %v569, 1
    %v574 = vpop.permute.xlu0 %573
    %575 = vrot.lane.b32.xlu0 %v570, 1
    %v576 = vpop.permute.xlu0 %575
    %v579 = vsub.f32 %v59, %v574
    %v580 = vsub.f32 %v60, %v576
    %582 = vset.pattern.permute.xlu0 0
    %583 = vperm.xlu0 %582, %v567
    %v584 = vpop.permute.xlu0 %583
    %587 = vset.pattern.permute.xlu0 0
    %588 = vperm.xlu0 %587, %v568
    %v589 = vpop.permute.xlu0 %588
    %v591 = vmul.f32 %v523, %v584
    %v592 = vmul.f32 %v524, %v584
    %v593 = vmul.f32 %v525, %v589
    %v594 = vmul.f32 %v526, %v589
    %596 = vset.pattern.permute.xlu0 1
    %597 = vperm.xlu0 %596, %v579
    %v598 = vpop.permute.xlu0 %597
    %601 = vset.pattern.permute.xlu0 1
    %602 = vperm.xlu0 %601, %v580
    %v603 = vpop.permute.xlu0 %602
    %v605 = vadd.f32 %v591, %v598
    %v606 = vadd.f32 %v592, %v598
    %v607 = vadd.f32 %v593, %v603
    %v608 = vadd.f32 %v594, %v603
    %vm609 = vcmp.gt.f32.partialorder %v605, 0.0
    %vm610 = vcmp.gt.f32.partialorder %v606, 0.0
    %v611 = vmin.f32 %v605, 0.0
    %v612 = vmin.f32 %v606, 0.0
    %v613 = vmul.f32 %v611, 1.442695
    %v614 = vpow.pop %v613
    %v615 = vmul.f32 %v612, 1.442695
    %v616 = vpow.pop %v615
    %v617 = vsub.f32 %v614, 1.0
    %v618 = vsub.f32 %v616, 1.0
    %v619 = vsel %vm609, %v605, %v617
    %v620 = vsel %vm610, %v606, %v618
    %v621 = vmul.f32 %v619, %v530
    %v622 = vmul.f32 %v620, %v534
    %623 = vrot.lane.b32.xlu0 %v621, 4
    %v624 = vpop.permute.xlu0 %623
    %625 = vrot.lane.b32.xlu0 %v622, 4
    %v626 = vpop.permute.xlu0 %625
    %v627 = vsel %vm67, %v624, %v626
    %v628 = vsel %vm67, %v626, %v624
    %629 = vrot.lane.b32.xlu0 %v621, 2
    %v630 = vpop.permute.xlu0 %629
    %631 = vrot.lane.b32.xlu0 %v622, 2
    %v632 = vpop.permute.xlu0 %631
    %v633 = vsel %vm74, %v630, %v632
    %v634 = vsel %vm74, %v632, %v630
    %636 = vrot.lane.b32.xlu0 %v58, 120
    %v637 = vpop.permute.xlu0 %636
    %v638 = vsel %vm83, %v637, 0
    %640 = vmatprep.subr.mxu0 %v633
    %641 = vmatpush1.msra.mxu0 %v634
    %642 = vmatprep.subr.mxu0 0.0
    %643 = vmatpush1.msra.mxu0 0.0
    %644 = vmatprep.subr.mxu0 0.0
    %645 = vmatpush1.msra.mxu0 0.0
    %646 = vmatprep.subr.mxu0 0.0
    %647 = vmatpush1.msra.mxu0 0.0
    %648 = vmatprep.subr.mxu0 0.0
    %649 = vmatpush1.msra.mxu0 0.0
    %650 = vmatprep.subr.mxu0 0.0
    %651 = vmatpush1.msra.mxu0 0.0
    %652 = vmatprep.subr.mxu0 0.0
    %653 = vmatpush1.msra.mxu0 0.0
    %654 = vmatprep.subr.mxu0 0.0
    %655 = vmatpush1.msra.mxu0 0.0
    %656 = vmatprep.subr.mxu0 0.0
    %657 = vmatpush1.msra.mxu0 0.0
    %658 = vmatprep.subr.mxu0 0.0
    %659 = vmatpush1.msra.mxu0 0.0
    %660 = vmatprep.subr.mxu0 0.0
    %661 = vmatpush1.msra.mxu0 0.0
    %662 = vmatprep.subr.mxu0 0.0
    %663 = vmatpush1.msra.mxu0 0.0
    %664 = vmatprep.subr.mxu0 0.0
    %665 = vmatpush1.msra.mxu0 0.0
    %666 = vmatprep.subr.mxu0 0.0
    %667 = vmatpush1.msra.mxu0 0.0
    %668 = vmatprep.subr.mxu0 0.0
    %669 = vmatpush1.msra.mxu0 0.0
    %670 = vmatprep.subr.mxu0 0.0
    %671 = vmatpush1.msra.mxu0 0.0
    %672 = vmatprep.subr.mxu0 0.0
    %673 = vmatpush1.msra.mxu0 0.0
    %674 = vmatprep.subr.mxu0 0.0
    %675 = vmatpush1.msra.mxu0 0.0
    %676 = vmatprep.subr.mxu0 0.0
    %677 = vmatpush1.msra.mxu0 0.0
    %678 = vmatprep.subr.mxu0 0.0
    %679 = vmatpush1.msra.mxu0 0.0
    %680 = vmatprep.subr.mxu0 0.0
    %681 = vmatpush1.msra.mxu0 0.0
    %682 = vmatprep.subr.mxu0 0.0
    %683 = vmatpush1.msra.mxu0 0.0
    %684 = vmatprep.subr.mxu0 0.0
    %685 = vmatpush1.msra.mxu0 0.0
    %686 = vmatprep.subr.mxu0 0.0
    %687 = vmatpush1.msra.mxu0 0.0
    %688 = vmatprep.subr.mxu0 0.0
    %689 = vmatpush1.msra.mxu0 0.0
    %690 = vmatprep.subr.mxu0 0.0
    %691 = vmatpush1.msra.mxu0 0.0
    %692 = vmatprep.subr.mxu0 0.0
    %693 = vmatpush1.msra.mxu0 0.0
    %694 = vmatprep.subr.mxu0 0.0
    %695 = vmatpush1.msra.mxu0 0.0
    %696 = vmatprep.subr.mxu0 0.0
    %697 = vmatpush1.msra.mxu0 0.0
    %698 = vmatprep.subr.mxu0 0.0
    %699 = vmatpush1.msra.mxu0 0.0
    %700 = vmatprep.subr.mxu0 0.0
    %701 = vmatpush1.msra.mxu0 0.0
    %702 = vmatprep.subr.mxu0 0.0
    %703 = vmatpush1.msra.mxu0 0.0
    %704 = vmatprep.mubr.f32.mxu0 0.0
    %705 = vmatmul.mubr.f32.gmra.mrb[0].mxu0 %v638
    %v706 = vpop.f32.mrb[0].mxu0
    %v707 = vadd.f32 0.0, %v706
    %v708 = vpop.f32.mrb[0].mxu0
    %v709 = vadd.f32 0.0, %v708
    %710 = vdwg.mxu0
    %v711 = vsel %vm83, %v58, 0
    %713 = vmatprep.subr.mxu0 %v627
    %714 = vmatpush1.msra.mxu0 %v628
    %715 = vmatprep.subr.mxu0 0.0
    %716 = vmatpush1.msra.mxu0 0.0
    %717 = vmatprep.subr.mxu0 0.0
    %718 = vmatpush1.msra.mxu0 0.0
    %719 = vmatprep.subr.mxu0 0.0
    %720 = vmatpush1.msra.mxu0 0.0
    %721 = vmatprep.subr.mxu0 0.0
    %722 = vmatpush1.msra.mxu0 0.0
    %723 = vmatprep.subr.mxu0 0.0
    %724 = vmatpush1.msra.mxu0 0.0
    %725 = vmatprep.subr.mxu0 0.0
    %726 = vmatpush1.msra.mxu0 0.0
    %727 = vmatprep.subr.mxu0 0.0
    %728 = vmatpush1.msra.mxu0 0.0
    %729 = vmatprep.subr.mxu0 0.0
    %730 = vmatpush1.msra.mxu0 0.0
    %731 = vmatprep.subr.mxu0 0.0
    %732 = vmatpush1.msra.mxu0 0.0
    %733 = vmatprep.subr.mxu0 0.0
    %734 = vmatpush1.msra.mxu0 0.0
    %735 = vmatprep.subr.mxu0 0.0
    %736 = vmatpush1.msra.mxu0 0.0
    %737 = vmatprep.subr.mxu0 0.0
    %738 = vmatpush1.msra.mxu0 0.0
    %739 = vmatprep.subr.mxu0 0.0
    %740 = vmatpush1.msra.mxu0 0.0
    %741 = vmatprep.subr.mxu0 0.0
    %742 = vmatpush1.msra.mxu0 0.0
    %743 = vmatprep.subr.mxu0 0.0
    %744 = vmatpush1.msra.mxu0 0.0
    %745 = vmatprep.subr.mxu0 0.0
    %746 = vmatpush1.msra.mxu0 0.0
    %747 = vmatprep.subr.mxu0 0.0
    %748 = vmatpush1.msra.mxu0 0.0
    %749 = vmatprep.subr.mxu0 0.0
    %750 = vmatpush1.msra.mxu0 0.0
    %751 = vmatprep.subr.mxu0 0.0
    %752 = vmatpush1.msra.mxu0 0.0
    %753 = vmatprep.subr.mxu0 0.0
    %754 = vmatpush1.msra.mxu0 0.0
    %755 = vmatprep.subr.mxu0 0.0
    %756 = vmatpush1.msra.mxu0 0.0
    %757 = vmatprep.subr.mxu0 0.0
    %758 = vmatpush1.msra.mxu0 0.0
    %759 = vmatprep.subr.mxu0 0.0
    %760 = vmatpush1.msra.mxu0 0.0
    %761 = vmatprep.subr.mxu0 0.0
    %762 = vmatpush1.msra.mxu0 0.0
    %763 = vmatprep.subr.mxu0 0.0
    %764 = vmatpush1.msra.mxu0 0.0
    %765 = vmatprep.subr.mxu0 0.0
    %766 = vmatpush1.msra.mxu0 0.0
    %767 = vmatprep.subr.mxu0 0.0
    %768 = vmatpush1.msra.mxu0 0.0
    %769 = vmatprep.subr.mxu0 0.0
    %770 = vmatpush1.msra.mxu0 0.0
    %771 = vmatprep.subr.mxu0 0.0
    %772 = vmatpush1.msra.mxu0 0.0
    %773 = vmatprep.subr.mxu0 0.0
    %774 = vmatpush1.msra.mxu0 0.0
    %775 = vmatprep.subr.mxu0 0.0
    %776 = vmatpush1.msra.mxu0 0.0
    %777 = vmatprep.mubr.f32.mxu0 0.0
    %778 = vmatmul.mubr.f32.gmra.mrb[0].mxu0 %v711
    %v779 = vpop.f32.mrb[0].mxu0
    %v780 = vadd.f32 %v707, %v779
    %v781 = vpop.f32.mrb[0].mxu0
    %v782 = vadd.f32 %v709, %v781
    %783 = vdwg.mxu0
    %784 = vrot.lane.b32.xlu0 %v58, 112
    %v785 = vpop.permute.xlu0 %784
    %v786 = vsel %vm83, %v785, 0
    %788 = vmatprep.subr.mxu0 %v622
    %789 = vmatpush1.msra.mxu0 %v621
    %790 = vmatprep.subr.mxu0 0.0
    %791 = vmatpush1.msra.mxu0 0.0
    %792 = vmatprep.subr.mxu0 0.0
    %793 = vmatpush1.msra.mxu0 0.0
    %794 = vmatprep.subr.mxu0 0.0
    %795 = vmatpush1.msra.mxu0 0.0
    %796 = vmatprep.subr.mxu0 0.0
    %797 = vmatpush1.msra.mxu0 0.0
    %798 = vmatprep.subr.mxu0 0.0
    %799 = vmatpush1.msra.mxu0 0.0
    %800 = vmatprep.subr.mxu0 0.0
    %801 = vmatpush1.msra.mxu0 0.0
    %802 = vmatprep.subr.mxu0 0.0
    %803 = vmatpush1.msra.mxu0 0.0
    %804 = vmatprep.subr.mxu0 0.0
    %805 = vmatpush1.msra.mxu0 0.0
    %806 = vmatprep.subr.mxu0 0.0
    %807 = vmatpush1.msra.mxu0 0.0
    %808 = vmatprep.subr.mxu0 0.0
    %809 = vmatpush1.msra.mxu0 0.0
    %810 = vmatprep.subr.mxu0 0.0
    %811 = vmatpush1.msra.mxu0 0.0
    %812 = vmatprep.subr.mxu0 0.0
    %813 = vmatpush1.msra.mxu0 0.0
    %814 = vmatprep.subr.mxu0 0.0
    %815 = vmatpush1.msra.mxu0 0.0
    %816 = vmatprep.subr.mxu0 0.0
    %817 = vmatpush1.msra.mxu0 0.0
    %818 = vmatprep.subr.mxu0 0.0
    %819 = vmatpush1.msra.mxu0 0.0
    %820 = vmatprep.subr.mxu0 0.0
    %821 = vmatpush1.msra.mxu0 0.0
    %822 = vmatprep.subr.mxu0 0.0
    %823 = vmatpush1.msra.mxu0 0.0
    %824 = vmatprep.subr.mxu0 0.0
    %825 = vmatpush1.msra.mxu0 0.0
    %826 = vmatprep.subr.mxu0 0.0
    %827 = vmatpush1.msra.mxu0 0.0
    %828 = vmatprep.subr.mxu0 0.0
    %829 = vmatpush1.msra.mxu0 0.0
    %830 = vmatprep.subr.mxu0 0.0
    %831 = vmatpush1.msra.mxu0 0.0
    %832 = vmatprep.subr.mxu0 0.0
    %833 = vmatpush1.msra.mxu0 0.0
    %834 = vmatprep.subr.mxu0 0.0
    %835 = vmatpush1.msra.mxu0 0.0
    %836 = vmatprep.subr.mxu0 0.0
    %837 = vmatpush1.msra.mxu0 0.0
    %838 = vmatprep.subr.mxu0 0.0
    %839 = vmatpush1.msra.mxu0 0.0
    %840 = vmatprep.subr.mxu0 0.0
    %841 = vmatpush1.msra.mxu0 0.0
    %842 = vmatprep.subr.mxu0 0.0
    %843 = vmatpush1.msra.mxu0 0.0
    %844 = vmatprep.subr.mxu0 0.0
    %845 = vmatpush1.msra.mxu0 0.0
    %846 = vmatprep.subr.mxu0 0.0
    %847 = vmatpush1.msra.mxu0 0.0
    %848 = vmatprep.subr.mxu0 0.0
    %849 = vmatpush1.msra.mxu0 0.0
    %850 = vmatprep.subr.mxu0 0.0
    %851 = vmatpush1.msra.mxu0 0.0
    %852 = vmatprep.mubr.f32.mxu0 0.0
    %853 = vmatmul.mubr.f32.gmra.mrb[0].mxu0 %v786
    %v854 = vpop.f32.mrb[0].mxu0
    %v855 = vadd.f32 0.0, %v854
    %v856 = vpop.f32.mrb[0].mxu0
    %v857 = vadd.f32 0.0, %v856
    %858 = vdwg.mxu0
    %v859 = vadd.f32 %v780, %v855
    %v860 = vadd.f32 %v782, %v857
    %861 = vrot.lane.b32.xlu0 %v621, 126
    %v862 = vpop.permute.xlu0 %861
    %863 = vrot.lane.b32.xlu0 %v622, 126
    %v864 = vpop.permute.xlu0 %863
    %v865 = vsel %vm339, %v862, %v864
    %v866 = vsel %vm339, %v864, %v862
    %867 = vrot.lane.b32.xlu0 %v58, 104
    %v868 = vpop.permute.xlu0 %867
    %v869 = vsel %vm83, %v868, 0
    %871 = vmatprep.subr.mxu0 %v866
    %872 = vmatpush1.msra.mxu0 %v865
    %873 = vmatprep.subr.mxu0 0.0
    %874 = vmatpush1.msra.mxu0 0.0
    %875 = vmatprep.subr.mxu0 0.0
    %876 = vmatpush1.msra.mxu0 0.0
    %877 = vmatprep.subr.mxu0 0.0
    %878 = vmatpush1.msra.mxu0 0.0
    %879 = vmatprep.subr.mxu0 0.0
    %880 = vmatpush1.msra.mxu0 0.0
    %881 = vmatprep.subr.mxu0 0.0
    %882 = vmatpush1.msra.mxu0 0.0
    %883 = vmatprep.subr.mxu0 0.0
    %884 = vmatpush1.msra.mxu0 0.0
    %885 = vmatprep.subr.mxu0 0.0
    %886 = vmatpush1.msra.mxu0 0.0
    %887 = vmatprep.subr.mxu0 0.0
    %888 = vmatpush1.msra.mxu0 0.0
    %889 = vmatprep.subr.mxu0 0.0
    %890 = vmatpush1.msra.mxu0 0.0
    %891 = vmatprep.subr.mxu0 0.0
    %892 = vmatpush1.msra.mxu0 0.0
    %893 = vmatprep.subr.mxu0 0.0
    %894 = vmatpush1.msra.mxu0 0.0
    %895 = vmatprep.subr.mxu0 0.0
    %896 = vmatpush1.msra.mxu0 0.0
    %897 = vmatprep.subr.mxu0 0.0
    %898 = vmatpush1.msra.mxu0 0.0
    %899 = vmatprep.subr.mxu0 0.0
    %900 = vmatpush1.msra.mxu0 0.0
    %901 = vmatprep.subr.mxu0 0.0
    %902 = vmatpush1.msra.mxu0 0.0
    %903 = vmatprep.subr.mxu0 0.0
    %904 = vmatpush1.msra.mxu0 0.0
    %905 = vmatprep.subr.mxu0 0.0
    %906 = vmatpush1.msra.mxu0 0.0
    %907 = vmatprep.subr.mxu0 0.0
    %908 = vmatpush1.msra.mxu0 0.0
    %909 = vmatprep.subr.mxu0 0.0
    %910 = vmatpush1.msra.mxu0 0.0
    %911 = vmatprep.subr.mxu0 0.0
    %912 = vmatpush1.msra.mxu0 0.0
    %913 = vmatprep.subr.mxu0 0.0
    %914 = vmatpush1.msra.mxu0 0.0
    %915 = vmatprep.subr.mxu0 0.0
    %916 = vmatpush1.msra.mxu0 0.0
    %917 = vmatprep.subr.mxu0 0.0
    %918 = vmatpush1.msra.mxu0 0.0
    %919 = vmatprep.subr.mxu0 0.0
    %920 = vmatpush1.msra.mxu0 0.0
    %921 = vmatprep.subr.mxu0 0.0
    %922 = vmatpush1.msra.mxu0 0.0
    %923 = vmatprep.subr.mxu0 0.0
    %924 = vmatpush1.msra.mxu0 0.0
    %925 = vmatprep.subr.mxu0 0.0
    %926 = vmatpush1.msra.mxu0 0.0
    %927 = vmatprep.subr.mxu0 0.0
    %928 = vmatpush1.msra.mxu0 0.0
    %929 = vmatprep.subr.mxu0 0.0
    %930 = vmatpush1.msra.mxu0 0.0
    %931 = vmatprep.subr.mxu0 0.0
    %932 = vmatpush1.msra.mxu0 0.0
    %933 = vmatprep.subr.mxu0 0.0
    %934 = vmatpush1.msra.mxu0 0.0
    %935 = vmatprep.mubr.f32.mxu0 0.0
    %936 = vmatmul.mubr.f32.gmra.mrb[0].mxu0 %v869
    %v937 = vpop.f32.mrb[0].mxu0
    %v938 = vadd.f32 0.0, %v937
    %v939 = vpop.f32.mrb[0].mxu0
    %v940 = vadd.f32 0.0, %v939
    %941 = vdwg.mxu0
    %v942 = vadd.f32 %v859, %v938
    %v943 = vadd.f32 %v860, %v940
    %944 = vrot.lane.b32.xlu0 %v621, 124
    %v945 = vpop.permute.xlu0 %944
    %946 = vrot.lane.b32.xlu0 %v622, 124
    %v947 = vpop.permute.xlu0 %946
    %v948 = vsel %vm435, %v945, %v947
    %v949 = vsel %vm435, %v947, %v945
    %950 = vrot.lane.b32.xlu0 %v58, 96
    %v951 = vpop.permute.xlu0 %950
    %v952 = vsel %vm83, %v951, 0
    %954 = vmatprep.subr.mxu0 %v949
    %955 = vmatpush1.msra.mxu0 %v948
    %956 = vmatprep.subr.mxu0 0.0
    %957 = vmatpush1.msra.mxu0 0.0
    %958 = vmatprep.subr.mxu0 0.0
    %959 = vmatpush1.msra.mxu0 0.0
    %960 = vmatprep.subr.mxu0 0.0
    %961 = vmatpush1.msra.mxu0 0.0
    %962 = vmatprep.subr.mxu0 0.0
    %963 = vmatpush1.msra.mxu0 0.0
    %964 = vmatprep.subr.mxu0 0.0
    %965 = vmatpush1.msra.mxu0 0.0
    %966 = vmatprep.subr.mxu0 0.0
    %967 = vmatpush1.msra.mxu0 0.0
    %968 = vmatprep.subr.mxu0 0.0
    %969 = vmatpush1.msra.mxu0 0.0
    %970 = vmatprep.subr.mxu0 0.0
    %971 = vmatpush1.msra.mxu0 0.0
    %972 = vmatprep.subr.mxu0 0.0
    %973 = vmatpush1.msra.mxu0 0.0
    %974 = vmatprep.subr.mxu0 0.0
    %975 = vmatpush1.msra.mxu0 0.0
    %976 = vmatprep.subr.mxu0 0.0
    %977 = vmatpush1.msra.mxu0 0.0
    %978 = vmatprep.subr.mxu0 0.0
    %979 = vmatpush1.msra.mxu0 0.0
    %980 = vmatprep.subr.mxu0 0.0
    %981 = vmatpush1.msra.mxu0 0.0
    %982 = vmatprep.subr.mxu0 0.0
    %983 = vmatpush1.msra.mxu0 0.0
    %984 = vmatprep.subr.mxu0 0.0
    %985 = vmatpush1.msra.mxu0 0.0
    %986 = vmatprep.subr.mxu0 0.0
    %987 = vmatpush1.msra.mxu0 0.0
    %988 = vmatprep.subr.mxu0 0.0
    %989 = vmatpush1.msra.mxu0 0.0
    %990 = vmatprep.subr.mxu0 0.0
    %991 = vmatpush1.msra.mxu0 0.0
    %992 = vmatprep.subr.mxu0 0.0
    %993 = vmatpush1.msra.mxu0 0.0
    %994 = vmatprep.subr.mxu0 0.0
    %995 = vmatpush1.msra.mxu0 0.0
    %996 = vmatprep.subr.mxu0 0.0
    %997 = vmatpush1.msra.mxu0 0.0
    %998 = vmatprep.subr.mxu0 0.0
    %999 = vmatpush1.msra.mxu0 0.0
    %1000 = vmatprep.subr.mxu0 0.0
    %1001 = vmatpush1.msra.mxu0 0.0
    %1002 = vmatprep.subr.mxu0 0.0
    %1003 = vmatpush1.msra.mxu0 0.0
    %1004 = vmatprep.subr.mxu0 0.0
    %1005 = vmatpush1.msra.mxu0 0.0
    %1006 = vmatprep.subr.mxu0 0.0
    %1007 = vmatpush1.msra.mxu0 0.0
    %1008 = vmatprep.subr.mxu0 0.0
    %1009 = vmatpush1.msra.mxu0 0.0
    %1010 = vmatprep.subr.mxu0 0.0
    %1011 = vmatpush1.msra.mxu0 0.0
    %1012 = vmatprep.subr.mxu0 0.0
    %1013 = vmatpush1.msra.mxu0 0.0
    %1014 = vmatprep.subr.mxu0 0.0
    %1015 = vmatpush1.msra.mxu0 0.0
    %1016 = vmatprep.subr.mxu0 0.0
    %1017 = vmatpush1.msra.mxu0 0.0
    %1018 = vmatprep.mubr.f32.mxu0 0.0
    %1019 = vmatmul.mubr.f32.gmra.mrb[0].mxu0 %v952
    %v1020 = vpop.f32.mrb[0].mxu0
    %v1021 = vadd.f32 0.0, %v1020
    %v1022 = vpop.f32.mrb[0].mxu0
    %v1023 = vadd.f32 0.0, %v1022
    %1024 = vdwg.mxu0
    %v1025 = vadd.f32 %v942, %v1021
    %v1026 = vadd.f32 %v943, %v1023
    %v1027 = vmul.f32 %v1025, %v530
    %v1028 = vmul.f32 %v1026, %v534
    %v1029 = vadd.f32 %v1027, %v1028
    %1030 = vadd.xlane.f32.xlu0 %v1029
    %v1031 = vpop.xlane.xlu0 %1030
    %v1032 = vmul.f32 %v1027, %v1025
    %v1033 = vmul.f32 %v1028, %v1026
    %v1034 = vadd.f32 %v1032, %v1033
    %1035 = vadd.xlane.f32.xlu0 %v1034
    %v1036 = vpop.xlane.xlu0 %1035
    %v1037 = vmul.f32 %v1031, 0.03125
    %v1038 = vmul.f32 %v1036, 0.03125
    %v1039 = vmul.f32 %v1037, %v1037
    %v1040 = vsub.f32 %v1038, %v1039
    %v1041 = vadd.f32 %v1040, 1e-05
    %v1042 = vrsqrt.pop %v1041
    %v1043 = vmul.f32 %v59, %v1042
    %v1044 = vmul.f32 %v1037, %v1043
    %1046 = vrot.lane.b32.xlu0 %v1044, 1
    %v1047 = vpop.permute.xlu0 %1046
    %v1049 = vsub.f32 %v59, %v1047
    %1051 = vset.pattern.permute.xlu0 2
    %1052 = vperm.xlu0 %1051, %v1043
    %v1053 = vpop.permute.xlu0 %1052
    %v1055 = vmul.f32 %v1025, %v1053
    %v1056 = vmul.f32 %v1026, %v1053
    %1058 = vset.pattern.permute.xlu0 3
    %1059 = vperm.xlu0 %1058, %v1049
    %v1060 = vpop.permute.xlu0 %1059
    %v1062 = vadd.f32 %v1055, %v1060
    %v1063 = vadd.f32 %v1056, %v1060
    %v1064 = vadd.f32 %v1062, %v607
    %v1065 = vadd.f32 %v1063, %v608
    %vm1066 = vcmp.gt.f32.partialorder %v1064, 0.0
    %vm1067 = vcmp.gt.f32.partialorder %v1065, 0.0
    %v1068 = vmin.f32 %v1064, 0.0
    %v1069 = vmin.f32 %v1065, 0.0
    %v1070 = vmul.f32 %v1068, 1.442695
    %v1071 = vpow.pop %v1070
    %v1072 = vmul.f32 %v1069, 1.442695
    %v1073 = vpow.pop %v1072
    %v1074 = vsub.f32 %v1071, 1.0
    %v1075 = vsub.f32 %v1073, 1.0
    %v1076 = vsel %vm1066, %v1064, %v1074
    %v1077 = vsel %vm1067, %v1065, %v1075
    %1078 = vst [vmem:[#allocation8] sm:$0xff] %v1076
    %1079 = vst [vmem:[#allocation8 + $0x8] sm:$0xff] %v1077
    // Predicated region
    $region26: #{tpu_custom_call.1} parent=1 // pred_check
      _
    $region27: #{tpu_custom_call.1} parent=1 // pred_check_branch
      %1081 = sbr.rel (0) target = $region29
    $region28: #{tpu_custom_call.1} parent=1 // pred_region
      %s1083 = ssub.s32 256, 256
      %1084 = vsyncadd [#allocation4], %s1083
      %s1086 = sshll.u32 [#allocation8], 4
      %s1087 = int_to_ptr.vmem [resolvable:$true] %s1086
      %1089 = dma.vmem_to_hbm [thread:$0]  %s1087, 256, %s3, [#allocation4]
    $region29: #{tpu_custom_call.1} parent=1 // pred_fallthru
      _
    // Predicated region
    $region30: #{tpu_custom_call.1} parent=1 // pred_check
      _
    $region31: #{tpu_custom_call.1} parent=1 // pred_check_branch
      %1091 = sbr.rel (0) target = $region33
    $region32: #{tpu_custom_call.1} parent=1 // pred_region
      %1092 = dma.done [#allocation4], 256
    $region33: #{tpu_custom_call.1} parent=1 // pred_fallthru
      _
    %1093 = vsyncpa [#allocation3], 1
    %1094 = vsyncpa [#allocation6], 1
    %1095 = vsyncpa [#allocation4], 1

</llo_original>
